<compile_context>
chip_gen: v7x
topology: tpu7x:2x2x1
jax: 0.10.0
libtpu: 0.0.40
codegen_flags: <defaults>
</compile_context>

<pallas_src>
import jax
import jax.numpy as jnp
from jax.experimental import pallas as pl
from jax.experimental.pallas import tpu as pltpu


def _player_kernel(w_ref, o_ref):
    # w_ref: (1, 2) f32 parameter, fully resident in VMEM.
    w = w_ref[...]
    # Numerically-stable softmax along the last (lane) axis == dim=1.
    m = jnp.max(w, axis=-1, keepdims=True)
    e = jnp.exp(w - m)                               # EUP
    s = jnp.sum(e, axis=-1, keepdims=True)           # XLU reduce
    p = e * pl.reciprocal(s, approx=True)            # EUP vrcp, no VALU divide
    o_ref[...] = p - 0.5


def player_forward(linear: jax.Array) -> jax.Array:
    """Equivalent of Player.forward(): softmax(linear, axis=1) - 0.5."""
    assert linear.ndim == 2
    # Keep the kernel cast-free: normalize dtype once in the wrapper.
    if linear.dtype != jnp.float32:
        linear = linear.astype(jnp.float32)
    # Gridless call: whole array is one VMEM block, single kernel invocation.
    return pl.pallas_call(
        _player_kernel,
        out_shape=jax.ShapeDtypeStruct(linear.shape, jnp.float32),
        in_specs=[pl.BlockSpec(memory_space=pltpu.VMEM)],
        out_specs=pl.BlockSpec(memory_space=pltpu.VMEM),
    )(linear)


if __name__ == "__main__":
    # Deterministic parameter init, same shape/distribution as torch.rand(1, 2)
    key = jax.random.PRNGKey(0)
    linear = jax.random.uniform(key, (1, 2), dtype=jnp.float32)

    out = player_forward(linear)
    out = jax.block_until_ready(out)

    # Reference check in plain JAX (approx reciprocal -> loosen tolerance a bit)
    ref = jax.nn.softmax(linear, axis=1) - 0.5
    assert out.shape == (1, 2)
    assert out.dtype == jnp.float32
    assert jnp.allclose(out, ref, atol=1e-3, rtol=1e-3), (out, ref)

    print("KERNEL_OK")
</pallas_src>

<mosaic_0001>
module attributes {stable_mosaic.version = 11 : i64} {
  func.func @_player_kernel(%arg0: memref<1x2xf32, #tpu.memory_space<vmem>>, %arg1: memref<1x2xf32, #tpu.memory_space<vmem>>) attributes {dimension_semantics = [], scalar_prefetch = 0 : i64, scratch_operands = 0 : i64, tpu.core_type = #tpu.core_type<tc>} {
    %c0 = arith.constant 0 : index
    %c0_0 = arith.constant 0 : index
    %0 = vector.load %arg0[%c0, %c0_0] : memref<1x2xf32, #tpu.memory_space<vmem>>, vector<1x2xf32>
    %cst = arith.constant dense<0xFF800000> : vector<1xf32>
    %1 = vector.multi_reduction <maximumf>, %0, %cst [1] : vector<1x2xf32> to vector<1xf32>
    %2 = vector.shape_cast %1 : vector<1xf32> to vector<1x1xf32>
    %3 = vector.broadcast %2 : vector<1x1xf32> to vector<1x2xf32>
    %4 = arith.subf %0, %3 : vector<1x2xf32>
    %5 = math.exp %4 : vector<1x2xf32>
    %cst_1 = arith.constant dense<0.000000e+00> : vector<1xf32>
    %6 = vector.multi_reduction <add>, %5, %cst_1 [1] : vector<1x2xf32> to vector<1xf32>
    %7 = vector.shape_cast %6 : vector<1xf32> to vector<1x1xf32>
    %8 = tpu.reciprocal %7 {approx = true} : vector<1x1xf32> -> vector<1x1xf32>
    %9 = vector.broadcast %8 : vector<1x1xf32> to vector<1x2xf32>
    %10 = arith.mulf %5, %9 : vector<1x2xf32>
    %cst_2 = arith.constant 5.000000e-01 : f32
    %11 = vector.broadcast %cst_2 : f32 to vector<1x2xf32>
    %12 = arith.subf %10, %11 : vector<1x2xf32>
    %c0_3 = arith.constant 0 : index
    %c0_4 = arith.constant 0 : index
    %13 = vector.load %arg1[%c0_3, %c0_4] : memref<1x2xf32, #tpu.memory_space<vmem>>, vector<1x2xf32>
    tpu.vector_store %arg1[%c0_3, %c0_4], %12 {strides = array<i32>} : memref<1x2xf32, #tpu.memory_space<vmem>>, vector<1x2xf32>,
    return
  }
}

</mosaic_0001>

<llo_original>
// kernel: tpu_custom_call.1
$region0: #{tpu_custom_call.1}
  #allocation0 [shape = 'u32[]', space=smem, size = 0x4, offset = 0x4, fixed_abs, tag = 'smem constant byte address 0x4 - core index']
  #allocation1 [shape = 'u32[144,128]{1,0:T(1,128)}', space=vmem, size = 0x12000, scoped, tag = 'internal scratch']
  %s0 = inlined_call_operand.hbm [shape: f32[1,2], index: 0, kind: input, shape index: {}]
  %s1 = inlined_call_operand.hbm [shape: f32[1,2], index: 1, kind: output, shape index: {}]
  %s2 = sld [smem:[#allocation0]]
  $region18: #{tpu_custom_call.1} parent=0
    _
  %s4 = ssub.s32 1, %s2
  %s5 = scalar_select 0, %s4, %s2
  $region1: #{tpu_custom_call.1} parent=0
    #allocation2 [shape = 'u8[512]{0}', space=vmem, size = 0x400, scoped, tag = 'input window, operand 0, single buffered']
    #allocation3 [shape = 's32[1]{0}', space=sflag, size = 0x4, scoped, tag = 'scoped memory for tpu_custom_call.1']
    #allocation4 [shape = 's32[1]{0}', space=sflag, size = 0x4, scoped, tag = 'scoped memory for tpu_custom_call.1']
    #allocation5 [shape = 'u8[512]{0}', space=vmem, size = 0x400, scoped, tag = 'output window, operand 0, single buffered']
    %6 = vsyncpa [#allocation3], 0
    %7 = vsyncpa [#allocation4], 0
    // Predicated region
    $region2: #{tpu_custom_call.1} parent=1 // pred_check
      _
    $region3: #{tpu_custom_call.1} parent=1 // pred_check_branch
      %9 = sbr.rel (0) target = $region5
    $region4: #{tpu_custom_call.1} parent=1 // pred_region
      %s11 = ssub.s32 16, 16
      %12 = vsyncadd [#allocation3], %s11
      %s14 = sshll.u32 [#allocation2], 4
      %s15 = int_to_ptr.vmem [resolvable:$true] %s14
      %17 = dma.hbm_to_vmem [thread:$0]  %s0, 16, %s15, [#allocation3]
    $region5: #{tpu_custom_call.1} parent=1 // pred_fallthru
      _
    // Predicated region
    $region6: #{tpu_custom_call.1} parent=1 // pred_check
      _
    $region7: #{tpu_custom_call.1} parent=1 // pred_check_branch
      %19 = sbr.rel (0) target = $region9
    $region8: #{tpu_custom_call.1} parent=1 // pred_region
      %20 = dma.done [#allocation3], 16
    $region9: #{tpu_custom_call.1} parent=1 // pred_fallthru
      _
    %v21 = vld [vmem:[#allocation2] sm:$0x1]
    %vm22 = vcmask 8192
    %v23 = vsel %vm22, %v21, -inf
    %24 = vmax.xlane.f32.xlu0 %v23
    %v25 = vpop.xlane.xlu0 %24
    %v26 = vsub.f32 %v21, %v25
    %v27 = vmul.f32 %v26, 1.442695
    %v28 = vpow.pop %v27
    %v29 = vsel %vm22, %v28, 0.0
    %30 = vadd.xlane.f32.xlu0 %v29
    %v31 = vpop.xlane.xlu0 %30
    %v32 = vrcp.pop %v31
    %v33 = vmul.f32 %v28, %v32
    %v34 = vsub.f32 %v33, 0.5
    %35 = vst.msk [vmem:[#allocation5] sm:$0x1] %vm22, %v34
    // Predicated region
    $region10: #{tpu_custom_call.1} parent=1 // pred_check
      _
    $region11: #{tpu_custom_call.1} parent=1 // pred_check_branch
      %37 = sbr.rel (0) target = $region13
    $region12: #{tpu_custom_call.1} parent=1 // pred_region
      %s39 = ssub.s32 16, 16
      %40 = vsyncadd [#allocation4], %s39
      %s42 = sshll.u32 [#allocation5], 4
      %s43 = int_to_ptr.vmem [resolvable:$true] %s42
      %45 = dma.vmem_to_hbm [thread:$0]  %s43, 16, %s1, [#allocation4]
    $region13: #{tpu_custom_call.1} parent=1 // pred_fallthru
      _
    // Predicated region
    $region14: #{tpu_custom_call.1} parent=1 // pred_check
      _
    $region15: #{tpu_custom_call.1} parent=1 // pred_check_branch
      %47 = sbr.rel (0) target = $region17
    $region16: #{tpu_custom_call.1} parent=1 // pred_region
      %48 = dma.done [#allocation4], 16
    $region17: #{tpu_custom_call.1} parent=1 // pred_fallthru
      _
    %49 = vsyncpa [#allocation3], 1
    %50 = vsyncpa [#allocation4], 1

</llo_original>
